<compile_context>
chip_gen: v7x
topology: tpu7x:2x2x1
jax: 0.10.0
libtpu: 0.0.40
codegen_flags: <defaults>
</compile_context>

<pallas_src>
import jax
import jax.numpy as jnp
from jax.experimental import pallas as pl
from jax.experimental.pallas import tpu as pltpu


# --------------------------------------------------------------------------------------
# Interpolation matrices (match PyTorch upsample_bilinear2d, align_corners=False).
# --------------------------------------------------------------------------------------
def _bilinear_matrix(in_size: int, out_size: int) -> jnp.ndarray:
    """Row-stochastic (out_size, in_size) bilinear interpolation matrix."""
    dst = jnp.arange(out_size, dtype=jnp.float32)
    src = (dst + 0.5) * (in_size / out_size) - 0.5
    src = jnp.maximum(src, 0.0)
    i0 = jnp.floor(src).astype(jnp.int32)
    i0 = jnp.minimum(i0, in_size - 1)
    i1 = jnp.minimum(i0 + 1, in_size - 1)
    frac = src - i0.astype(jnp.float32)
    rows = jnp.arange(out_size)
    A = jnp.zeros((out_size, in_size), dtype=jnp.float32)
    A = A.at[rows, i0].add(1.0 - frac)
    A = A.at[rows, i1].add(frac)
    return A


# --------------------------------------------------------------------------------------
# Kernels
# --------------------------------------------------------------------------------------
def _upsample_kron_kernel(x_ref, k_ref, o_ref):
    # x_ref: (TB, H*W)   k_ref: (H*W, H_out*W_out)   o_ref: (TB, H_out*W_out)
    o_ref[...] = jnp.dot(
        x_ref[...], k_ref[...], preferred_element_type=jnp.float32
    ).astype(o_ref.dtype)


def _upsample_separable_fused_kernel(x_ref, awt_ref, aht_ref, o_ref):
    # x_ref: (TB, H, W)  awt_ref: (W, W_out)  aht_ref: (H, H_out)  o_ref: (TB, H_out, W_out)
    tb, h, w = x_ref.shape
    h_out = aht_ref.shape[1]
    w_out = awt_ref.shape[1]
    # W-pass: one MXU matmul with M = TB*H (free reshape requires H % 8 == 0).
    t = jnp.dot(x_ref[...].reshape(tb * h, w), awt_ref[...],
                preferred_element_type=jnp.float32)                  # (TB*H, W_out)
    # Corner turn: batched minor-dim transpose (XLU), then H-pass as one MXU matmul
    # with M = TB*W_out (free reshape requires W_out % 8 == 0).  No A_h broadcast,
    # no per-image tiny matmuls.
    t = jnp.swapaxes(t.reshape(tb, h, w_out), 1, 2)                  # (TB, W_out, H)
    y = jnp.dot(t.reshape(tb * w_out, h), aht_ref[...],
                preferred_element_type=jnp.float32)                  # (TB*W_out, H_out)
    y = jnp.swapaxes(y.reshape(tb, w_out, h_out), 1, 2)              # (TB, H_out, W_out)
    o_ref[...] = y.astype(o_ref.dtype)


def _upsample_separable_loop_kernel(x_ref, awt_ref, ah_ref, o_ref):
    # Fallback for sublane-unfriendly shapes: per-image 2-D matmuls, no broadcasts.
    # x_ref: (TB, H, W)  awt_ref: (W, W_out)  ah_ref: (H_out, H)  o_ref: (TB, H_out, W_out)
    tb = x_ref.shape[0]
    awt = awt_ref[...]
    ah = ah_ref[...]

    @pl.loop(0, tb)
    def _(b):
        t = jnp.dot(x_ref[b], awt, preferred_element_type=jnp.float32)   # (H, W_out)
        y = jnp.dot(ah, t, preferred_element_type=jnp.float32)           # (H_out, W_out)
        o_ref[b] = y.astype(o_ref.dtype)


# --------------------------------------------------------------------------------------
# Generation-aware policy
# --------------------------------------------------------------------------------------
_KRON_MAX_BYTES = 2 * 1024 * 1024   # hard cap on the Kronecker matrix (belt & braces)

_GEN_CONFIG = {
    # v7x: 2 TensorCores, 64 MiB VMEM, 3.2 TB/s HBM -> low f32 ridge, small blocks.
    "v7": dict(num_tc=2, vmem_limit=32 * 1024 * 1024,
               block_target=4 * 1024 * 1024, kron_hw_cutoff=128),
    # v6e: 1 TC, 128 MiB VMEM, strong MXU -> bigger blocks, higher Kron crossover.
    "v6": dict(num_tc=1, vmem_limit=64 * 1024 * 1024,
               block_target=12 * 1024 * 1024, kron_hw_cutoff=256),
    # v5e: 1 TC, 128 MiB VMEM, weak f32 MXU -> strict Kron cutoff.
    "v5": dict(num_tc=1, vmem_limit=64 * 1024 * 1024,
               block_target=12 * 1024 * 1024, kron_hw_cutoff=128),
    "unknown": dict(num_tc=1, vmem_limit=32 * 1024 * 1024,
                    block_target=8 * 1024 * 1024, kron_hw_cutoff=256),
}


def _tpu_generation() -> str:
    try:
        kind = jax.devices()[0].device_kind.lower()
    except Exception:
        return "unknown"
    for tag in ("v7", "v6", "v5"):
        if tag in kind:
            return tag
    return "unknown"


def _round_up(x: int, m: int) -> int:
    return -(-x // m) * m


def _choose_block_images(num_images: int, per_image_bytes: int, *,
                         block_bytes_target: int, num_tc: int) -> int:
    """Images per grid step: multiple of 8, working set under the per-gen target.

    Single-TC parts keep the largest block (maximizes MXU M, amortizes ~0.35us/step).
    On multi-TC parts (v7x) we only ensure ceil(B/TB) >= num_tc, and never shrink TB
    below 128 to do it.
    """
    tb = min(256, _round_up(max(num_images, 1), 8))
    while tb > 8 and tb * per_image_bytes > block_bytes_target:
        tb = max(8, _round_up(tb // 2, 8))
    while num_tc > 1 and tb > 128 and -(-num_images // tb) < num_tc:
        tb = max(8, _round_up(tb // 2, 8))
    return tb


# --------------------------------------------------------------------------------------
# Wrapper
# --------------------------------------------------------------------------------------
def _call_separable(x_flat, awt, a2, *, fused, tb, n_blocks, out_dtype,
                    compiler_params, cost):
    B, H, W = x_flat.shape
    Wo = awt.shape[1]
    Ho = a2.shape[1] if fused else a2.shape[0]
    kernel = _upsample_separable_fused_kernel if fused else _upsample_separable_loop_kernel
    return pl.pallas_call(
        kernel,
        out_shape=jax.ShapeDtypeStruct((B, Ho, Wo), out_dtype),
        grid_spec=pltpu.PrefetchScalarGridSpec(
            num_scalar_prefetch=0,
            grid=(n_blocks,),
            in_specs=[
                pl.BlockSpec((tb, H, W), lambda b: (b, 0, 0)),
                pl.BlockSpec(awt.shape, lambda b: (0, 0)),
                pl.BlockSpec(a2.shape, lambda b: (0, 0)),
            ],
            out_specs=pl.BlockSpec((tb, Ho, Wo), lambda b: (b, 0, 0)),
        ),
        compiler_params=compiler_params,
        cost_estimate=cost,
    )(x_flat, awt, a2)


def upsample_bilinear(x: jnp.ndarray, scale: int = 2) -> jnp.ndarray:
    """x: (N, C, H, W) -> (N, C, H*scale, W*scale), bilinear, align_corners=False."""
    N, C, H, W = x.shape
    Ho, Wo = H * scale, W * scale
    B = N * C
    itemsize = jnp.dtype(x.dtype).itemsize

    cfg = _GEN_CONFIG.get(_tpu_generation(), _GEN_CONFIG["unknown"])
    compiler_params = pltpu.CompilerParams(
        dimension_semantics=("parallel",),
        vmem_limit_bytes=cfg["vmem_limit"],
    )

    A_h = _bilinear_matrix(H, Ho)   # (Ho, H)
    A_w = _bilinear_matrix(W, Wo)   # (Wo, W)

    # --- Kronecker single-matmul path: only while it stays memory-bound (AI gate). ---
    kron_bytes = (H * W) * (Ho * Wo) * 4
    if (H * W) <= cfg["kron_hw_cutoff"] and kron_bytes <= _KRON_MAX_BYTES:
        per_image = (2 * (H * W) + 2 * (Ho * Wo)) * itemsize + (Ho * Wo) * 4
        tb = _choose_block_images(B, per_image,
                                  block_bytes_target=cfg["block_target"],
                                  num_tc=cfg["num_tc"])
        n_blocks = pl.cdiv(B, tb)
        K = jnp.einsum("oh,pw->hwop", A_h, A_w).reshape(H * W, Ho * Wo)
        cost = pl.CostEstimate(
            flops=2 * B * (H * W) * (Ho * Wo),
            transcendentals=0,
            bytes_accessed=(B * (H * W + Ho * Wo)) * itemsize + kron_bytes,
        )
        out_flat = pl.pallas_call(
            _upsample_kron_kernel,
            out_shape=jax.ShapeDtypeStruct((B, Ho * Wo), x.dtype),
            grid_spec=pltpu.PrefetchScalarGridSpec(
                num_scalar_prefetch=0,
                grid=(n_blocks,),
                in_specs=[
                    pl.BlockSpec((tb, H * W), lambda b: (b, 0)),
                    pl.BlockSpec((H * W, Ho * Wo), lambda b: (0, 0)),
                ],
                out_specs=pl.BlockSpec((tb, Ho * Wo), lambda b: (b, 0)),
            ),
            compiler_params=compiler_params,
            cost_estimate=cost,
        )(x.reshape(B, H * W), K)
        return out_flat.reshape(N, C, Ho, Wo)

    # --- Separable path (two fused MXU matmuls per block). ---
    per_image = ((2 * H * W + 2 * Ho * Wo) * itemsize
                 + (3 * H * Wo + 2 * Ho * Wo) * 4)          # incl. in-kernel temporaries
    tb = _choose_block_images(B, per_image,
                              block_bytes_target=cfg["block_target"],
                              num_tc=cfg["num_tc"])
    n_blocks = pl.cdiv(B, tb)
    cost = pl.CostEstimate(
        flops=2 * B * (H * W * Wo + Wo * H * Ho),
        transcendentals=0,
        bytes_accessed=B * (H * W + Ho * Wo) * itemsize,
    )
    x_flat = x.reshape(B, H, W)

    if (H % 8 == 0) and (Wo % 8 == 0):
        try:
            out = _call_separable(x_flat, A_w.T, A_h.T, fused=True, tb=tb,
                                  n_blocks=n_blocks, out_dtype=x.dtype,
                                  compiler_params=compiler_params, cost=cost)
            return jax.block_until_ready(out).reshape(N, C, Ho, Wo)
        except Exception:
            pass  # defensive: fall back to the always-lowerable per-image loop kernel

    out = _call_separable(x_flat, A_w.T, A_h, fused=False, tb=tb,
                          n_blocks=n_blocks, out_dtype=x.dtype,
                          compiler_params=compiler_params, cost=cost)
    return out.reshape(N, C, Ho, Wo)


# --------------------------------------------------------------------------------------
# Pure-JAX reference + demo
# --------------------------------------------------------------------------------------
def _reference_upsample(x: jnp.ndarray, scale: int = 2) -> jnp.ndarray:
    N, C, H, W = x.shape
    A_h = _bilinear_matrix(H, H * scale)
    A_w = _bilinear_matrix(W, W * scale)
    return jnp.einsum("oh,nchw,pw->ncop", A_h, x, A_w)


if __name__ == "__main__":
    keys = jax.random.split(jax.random.PRNGKey(0), 4)

    # (1) Tiny map -> Kronecker single-matmul path on every generation.
    x0 = jax.random.normal(keys[0], (2, 4, 8, 8), dtype=jnp.float32)
    y0 = jax.block_until_ready(upsample_bilinear(x0, 2))
    assert y0.shape == (2, 4, 16, 16), y0.shape
    assert jnp.allclose(y0, _reference_upsample(x0, 2), atol=1e-5, rtol=1e-5)

    # (2) The module's nominal shape; Kron on v6e, fused separable on v5e/v7x.
    x1 = jax.random.normal(keys[1], (2, 4, 16, 16), dtype=jnp.float32)
    y1 = jax.block_until_ready(upsample_bilinear(x1, 2))
    assert y1.shape == (2, 4, 32, 32), y1.shape
    assert jnp.allclose(y1, _reference_upsample(x1, 2), atol=1e-5, rtol=1e-5)

    # (3) Bigger map, ragged batch (B=3 < TB): fused separable path + masked tail block.
    x2 = jax.random.normal(keys[2], (1, 3, 24, 40), dtype=jnp.float32)
    y2 = jax.block_until_ready(upsample_bilinear(x2, 2))
    assert y2.shape == (1, 3, 48, 80), y2.shape
    assert jnp.allclose(y2, _reference_upsample(x2, 2), atol=1e-5, rtol=1e-5)

    # (4) H not a multiple of 8 -> per-image loop fallback (no broadcasts, 2-D dots).
    x3 = jax.random.normal(keys[3], (1, 2, 10, 30), dtype=jnp.float32)
    y3 = jax.block_until_ready(upsample_bilinear(x3, 2))
    assert y3.shape == (1, 2, 20, 60), y3.shape
    assert jnp.allclose(y3, _reference_upsample(x3, 2), atol=1e-5, rtol=1e-5)

    print("KERNEL_OK")
</pallas_src>

<mosaic_0001>
module attributes {stable_mosaic.version = 11 : i64} {
  func.func @_upsample_kron_kernel(%arg0: i32, %arg1: memref<8x64xf32, #tpu.memory_space<vmem>>, %arg2: memref<64x256xf32, #tpu.memory_space<vmem>>, %arg3: memref<8x256xf32, #tpu.memory_space<vmem>>) attributes {dimension_semantics = [#tpu.dimension_semantics<parallel>], iteration_bounds = array<i64: 1>, scalar_prefetch = 0 : i64, scratch_operands = 0 : i64, tpu.core_type = #tpu.core_type<tc>, window_params = [{transform_indices = @transform_0, window_bounds = array<i64: 8, 64>}, {pipeline_mode = #tpu.pipeline_mode<synchronous>, transform_indices = @transform_1, window_bounds = array<i64: 64, 256>}, {transform_indices = @transform_2, window_bounds = array<i64: 8, 256>}]} {
    %c0 = arith.constant 0 : index
    %c0_0 = arith.constant 0 : index
    %0 = vector.load %arg1[%c0, %c0_0] : memref<8x64xf32, #tpu.memory_space<vmem>>, vector<8x64xf32>
    %c0_1 = arith.constant 0 : index
    %c0_2 = arith.constant 0 : index
    %1 = vector.load %arg2[%c0_1, %c0_2] : memref<64x256xf32, #tpu.memory_space<vmem>>, vector<64x256xf32>
    %cst = arith.constant dense<0.000000e+00> : vector<8x256xf32>
    %2 = tpu.matmul %0, %1, %cst {dimension_numbers = #tpu.dot_dimension_numbers<[1], [0], [0], [1], [0, 0, 1, 1], [], []>} : vector<8x64xf32>, vector<64x256xf32>, vector<8x256xf32> -> vector<8x256xf32>
    %c0_3 = arith.constant 0 : index
    %c0_4 = arith.constant 0 : index
    %3 = vector.load %arg3[%c0_3, %c0_4] : memref<8x256xf32, #tpu.memory_space<vmem>>, vector<8x256xf32>
    tpu.vector_store %arg3[%c0_3, %c0_4], %2 {strides = array<i32>} : memref<8x256xf32, #tpu.memory_space<vmem>>, vector<8x256xf32>,
    return
  }
  func.func @transform_0(%arg0: i32) -> (i32, i32) {
    %c0_i32 = arith.constant 0 : i32
    %c0_i32_0 = arith.constant 0 : i32
    return %arg0, %c0_i32 : i32, i32
  }
  func.func @transform_1(%arg0: i32) -> (i32, i32) {
    %c0_i32 = arith.constant 0 : i32
    %c0_i32_0 = arith.constant 0 : i32
    %c0_i32_1 = arith.constant 0 : i32
    return %c0_i32, %c0_i32_0 : i32, i32
  }
  func.func @transform_2(%arg0: i32) -> (i32, i32) {
    %c0_i32 = arith.constant 0 : i32
    %c0_i32_0 = arith.constant 0 : i32
    return %arg0, %c0_i32 : i32, i32
  }
}

</mosaic_0001>

<llo_original>
// kernel: tpu_custom_call.1
$region0: #{tpu_custom_call.1}
  #allocation0 [shape = 'u32[]', space=smem, size = 0x4, offset = 0x4, fixed_abs, tag = 'smem constant byte address 0x4 - core index']
  #allocation1 [shape = 'u32[144,128]{1,0:T(1,128)}', space=vmem, size = 0x12000, scoped, tag = 'internal scratch']
  %s0 = inlined_call_operand.hbm [shape: f32[8,64], index: 0, kind: input, shape index: {}]
  %s1 = inlined_call_operand.hbm [shape: f32[64,256], index: 1, kind: input, shape index: {}]
  %s2 = inlined_call_operand.hbm [shape: f32[8,256], index: 2, kind: output, shape index: {}]
  %s3 = sld [smem:[#allocation0]]
  $region26: #{tpu_custom_call.1} parent=0
    _
  %s5 = ssub.s32 1, %s3
  %s6 = scalar_select 0, %s5, %s3
  $region1: #{tpu_custom_call.1} parent=0
    #allocation2 [shape = 'u8[4096]{0}', space=vmem, size = 0x1000, scoped, tag = 'input window, operand 0, single buffered']
    #allocation3 [shape = 's32[1]{0}', space=sflag, size = 0x4, scoped, tag = 'scoped memory for tpu_custom_call.1']
    #allocation4 [shape = 's32[1]{0}', space=sflag, size = 0x4, scoped, tag = 'scoped memory for tpu_custom_call.1']
    #allocation5 [shape = 'u8[65536]{0}', space=vmem, size = 0x10000, scoped, tag = 'input window, operand 1, single buffered']
    #allocation6 [shape = 's32[1]{0}', space=sflag, size = 0x4, scoped, tag = 'scoped memory for tpu_custom_call.1']
    #allocation7 [shape = 'u8[8192]{0}', space=vmem, size = 0x2000, scoped, tag = 'output window, operand 0, single buffered']
    %7 = vsyncpa [#allocation3], 0
    %8 = vsyncpa [#allocation6], 0
    %9 = vsyncpa [#allocation4], 0
    // Predicated region
    $region2: #{tpu_custom_call.1} parent=1 // pred_check
      _
    $region3: #{tpu_custom_call.1} parent=1 // pred_check_branch
      %11 = sbr.rel (0) target = $region5
    $region4: #{tpu_custom_call.1} parent=1 // pred_region
      %s13 = ssub.s32 128, 128
      %14 = vsyncadd [#allocation3], %s13
      %s16 = sshll.u32 [#allocation2], 4
      %s17 = int_to_ptr.vmem [resolvable:$true] %s16
      %19 = dma.hbm_to_vmem [thread:$0]  %s0, 128, %s17, [#allocation3]
    $region5: #{tpu_custom_call.1} parent=1 // pred_fallthru
      _
    // Predicated region
    $region6: #{tpu_custom_call.1} parent=1 // pred_check
      _
    $region7: #{tpu_custom_call.1} parent=1 // pred_check_branch
      %21 = sbr.rel (0) target = $region9
    $region8: #{tpu_custom_call.1} parent=1 // pred_region
      %s23 = ssub.s32 2048, 2048
      %24 = vsyncadd [#allocation6], %s23
      %s25 = sshll.u32 [#allocation5], 4
      %s26 = int_to_ptr.vmem [resolvable:$true] %s25
      %31 = dma.hbm_to_vmem [thread:$0]  %s1, 2048, %s26, [#allocation6], 256, 256, 16
    $region9: #{tpu_custom_call.1} parent=1 // pred_fallthru
      _
    // Predicated region
    $region10: #{tpu_custom_call.1} parent=1 // pred_check
      _
    $region11: #{tpu_custom_call.1} parent=1 // pred_check_branch
      %33 = sbr.rel (0) target = $region13
    $region12: #{tpu_custom_call.1} parent=1 // pred_region
      %34 = dma.done [#allocation3], 128
    $region13: #{tpu_custom_call.1} parent=1 // pred_fallthru
      _
    // Predicated region
    $region14: #{tpu_custom_call.1} parent=1 // pred_check
      _
    $region15: #{tpu_custom_call.1} parent=1 // pred_check_branch
      %36 = sbr.rel (0) target = $region17
    $region16: #{tpu_custom_call.1} parent=1 // pred_region
      %37 = dma.done [#allocation6], 2048
    $region17: #{tpu_custom_call.1} parent=1 // pred_fallthru
      _
    %v38 = vld [vmem:[#allocation2] sm:$0xff]
    %v39 = vld [vmem:[#allocation5] sm:$0xff]
    %v40 = vld [vmem:[#allocation5 + $0x8] sm:$0xff]
    %v41 = vld [vmem:[#allocation5 + $0x10] sm:$0xff]
    %v42 = vld [vmem:[#allocation5 + $0x18] sm:$0xff]
    %v43 = vld [vmem:[#allocation5 + $0x20] sm:$0xff]
    %v44 = vld [vmem:[#allocation5 + $0x28] sm:$0xff]
    %v45 = vld [vmem:[#allocation5 + $0x30] sm:$0xff]
    %v46 = vld [vmem:[#allocation5 + $0x38] sm:$0xff]
    %v47 = vld [vmem:[#allocation5 + $0x40] sm:$0xff]
    %v48 = vld [vmem:[#allocation5 + $0x48] sm:$0xff]
    %v49 = vld [vmem:[#allocation5 + $0x50] sm:$0xff]
    %v50 = vld [vmem:[#allocation5 + $0x58] sm:$0xff]
    %v51 = vld [vmem:[#allocation5 + $0x60] sm:$0xff]
    %v52 = vld [vmem:[#allocation5 + $0x68] sm:$0xff]
    %v53 = vld [vmem:[#allocation5 + $0x70] sm:$0xff]
    %v54 = vld [vmem:[#allocation5 + $0x78] sm:$0xff]
    %vm55 = vcmask 523264
    %v57 = vsel %vm55, %v38, 0
    %59 = vmatprep.subr.mxu0 %v40
    %60 = vmatpush1.msra.mxu0 %v39
    %61 = vmatprep.subr.mxu0 %v42
    %62 = vmatpush1.msra.mxu0 %v41
    %63 = vmatprep.subr.mxu0 %v44
    %64 = vmatpush1.msra.mxu0 %v43
    %65 = vmatprep.subr.mxu0 %v46
    %66 = vmatpush1.msra.mxu0 %v45
    %67 = vmatprep.subr.mxu0 %v48
    %68 = vmatpush1.msra.mxu0 %v47
    %69 = vmatprep.subr.mxu0 %v50
    %70 = vmatpush1.msra.mxu0 %v49
    %71 = vmatprep.subr.mxu0 %v52
    %72 = vmatpush1.msra.mxu0 %v51
    %73 = vmatprep.subr.mxu0 %v54
    %74 = vmatpush1.msra.mxu0 %v53
    %75 = vmatprep.subr.mxu0 0.0
    %76 = vmatpush1.msra.mxu0 0.0
    %77 = vmatprep.subr.mxu0 0.0
    %78 = vmatpush1.msra.mxu0 0.0
    %79 = vmatprep.subr.mxu0 0.0
    %80 = vmatpush1.msra.mxu0 0.0
    %81 = vmatprep.subr.mxu0 0.0
    %82 = vmatpush1.msra.mxu0 0.0
    %83 = vmatprep.subr.mxu0 0.0
    %84 = vmatpush1.msra.mxu0 0.0
    %85 = vmatprep.subr.mxu0 0.0
    %86 = vmatpush1.msra.mxu0 0.0
    %87 = vmatprep.subr.mxu0 0.0
    %88 = vmatpush1.msra.mxu0 0.0
    %89 = vmatprep.subr.mxu0 0.0
    %90 = vmatpush1.msra.mxu0 0.0
    %91 = vmatprep.subr.mxu0 0.0
    %92 = vmatpush1.msra.mxu0 0.0
    %93 = vmatprep.subr.mxu0 0.0
    %94 = vmatpush1.msra.mxu0 0.0
    %95 = vmatprep.subr.mxu0 0.0
    %96 = vmatpush1.msra.mxu0 0.0
    %97 = vmatprep.subr.mxu0 0.0
    %98 = vmatpush1.msra.mxu0 0.0
    %99 = vmatprep.subr.mxu0 0.0
    %100 = vmatpush1.msra.mxu0 0.0
    %101 = vmatprep.subr.mxu0 0.0
    %102 = vmatpush1.msra.mxu0 0.0
    %103 = vmatprep.subr.mxu0 0.0
    %104 = vmatpush1.msra.mxu0 0.0
    %105 = vmatprep.subr.mxu0 0.0
    %106 = vmatpush1.msra.mxu0 0.0
    %107 = vmatprep.subr.mxu0 0.0
    %108 = vmatpush1.msra.mxu0 0.0
    %109 = vmatprep.subr.mxu0 0.0
    %110 = vmatpush1.msra.mxu0 0.0
    %111 = vmatprep.subr.mxu0 0.0
    %112 = vmatpush1.msra.mxu0 0.0
    %113 = vmatprep.subr.mxu0 0.0
    %114 = vmatpush1.msra.mxu0 0.0
    %115 = vmatprep.subr.mxu0 0.0
    %116 = vmatpush1.msra.mxu0 0.0
    %117 = vmatprep.subr.mxu0 0.0
    %118 = vmatpush1.msra.mxu0 0.0
    %119 = vmatprep.subr.mxu0 0.0
    %120 = vmatpush1.msra.mxu0 0.0
    %121 = vmatprep.subr.mxu0 0.0
    %122 = vmatpush1.msra.mxu0 0.0
    %123 = vmatprep.mubr.f32.mxu0 0.0
    %124 = vmatmul.mubr.f32.gmra.mrb[0].mxu0 %v57
    %v125 = vpop.f32.mrb[0].mxu0
    %v126 = vadd.f32 0.0, %v125
    %v127 = vpop.f32.mrb[0].mxu0
    %v128 = vadd.f32 0.0, %v127
    %129 = vdwg.mxu0
    %130 = vst [vmem:[#allocation7] sm:$0xff] %v126
    %131 = vst [vmem:[#allocation7 + $0x8] sm:$0xff] %v128
    // Predicated region
    $region18: #{tpu_custom_call.1} parent=1 // pred_check
      _
    $region19: #{tpu_custom_call.1} parent=1 // pred_check_branch
      %133 = sbr.rel (0) target = $region21
    $region20: #{tpu_custom_call.1} parent=1 // pred_region
      %s135 = ssub.s32 256, 256
      %136 = vsyncadd [#allocation4], %s135
      %s138 = sshll.u32 [#allocation7], 4
      %s139 = int_to_ptr.vmem [resolvable:$true] %s138
      %141 = dma.vmem_to_hbm [thread:$0]  %s139, 256, %s2, [#allocation4]
    $region21: #{tpu_custom_call.1} parent=1 // pred_fallthru
      _
    // Predicated region
    $region22: #{tpu_custom_call.1} parent=1 // pred_check
      _
    $region23: #{tpu_custom_call.1} parent=1 // pred_check_branch
      %143 = sbr.rel (0) target = $region25
    $region24: #{tpu_custom_call.1} parent=1 // pred_region
      %144 = dma.done [#allocation4], 256
    $region25: #{tpu_custom_call.1} parent=1 // pred_fallthru
      _
    %145 = vsyncpa [#allocation3], 1
    %146 = vsyncpa [#allocation6], 1
    %147 = vsyncpa [#allocation4], 1

</llo_original>
